<compile_context>
chip_gen: v7x
topology: tpu7x:2x2x1
jax: 0.10.0
libtpu: 0.0.40
codegen_flags: <defaults>
</compile_context>

<pallas_src>
import functools
import math

import jax
import jax.numpy as jnp
from jax.experimental import pallas as pl
from jax.experimental.pallas import tpu as pltpu


def _round_up(x, m):
    return (x + m - 1) // m * m


def _patchify_nonoverlap_kernel(x_ref, o_ref, *, seq_start, new_seq_len,
                                pack, bt, num_channels):
    """patch_stride == patch_length: unfold is a reshape; only a transpose remains.

    x_ref : (bt, S, C)                      VMEM tile of the input
    o_ref : (bt, C, P*L)  or  (bt*C, P*L)   lane-dense VMEM tile of the output
    """
    slab = x_ref[:, seq_start:seq_start + new_seq_len, :]      # (bt, P*L, C)
    out = jnp.transpose(slab, (0, 2, 1))                        # (bt, C, P*L)
    if pack:
        # Static-offset sublane stores (avoids a (bt,C,PL)->(bt*C,PL) value reshape
        # that could force a Mosaic relayout copy).  The HBM write-back DMA of the
        # packed block is fully dense either way.
        C = num_channels
        for b in range(bt):
            o_ref[b * C:(b + 1) * C, :] = out[b]
    else:
        o_ref[...] = out


def _patchify_gather_kernel(x_ref, o_ref, gather_ref, *, seq_start,
                            patch_length, patch_stride, num_patches,
                            pack, bt, num_channels):
    """General (overlapping / gapped) stride.

    x_ref      : (bt, S, C)                      VMEM tile of the input
    o_ref      : (bt, C, P*L) or (bt*C, P*L)     lane-dense VMEM tile of the output
    gather_ref : (bt, P*L, C)                    VMEM scratch with the unfolded patches
    """
    # Step 1: gather strided (L, C) windows into a dense (bt, P*L, C) slab.
    # All offsets are static Python ints -> plain sublane-sliced copies, no XLU.
    for p in range(num_patches):
        start = seq_start + p * patch_stride
        gather_ref[:, p * patch_length:(p + 1) * patch_length, :] = (
            x_ref[:, start:start + patch_length, :])

    # Step 2: one batched (bt, P*L, C) -> (bt, C, P*L) transpose.
    out = jnp.transpose(gather_ref[...], (0, 2, 1))
    if pack:
        C = num_channels
        for b in range(bt):
            o_ref[b * C:(b + 1) * C, :] = out[b]
    else:
        o_ref[...] = out


def _plan_batch_tile(B, S, C, PL, itemsize, non_overlapping,
                     target_bytes=6 << 20, max_bt=64):
    """Pick (pack, bt, grid, padded_batch, per_elem_padded_bytes)."""
    # Sublane-pack the output across batch when C is not a multiple of 8
    # (otherwise the (bt, C, PL) block already has no sublane padding waste).
    pack = (C % 8) != 0
    # bt must keep bt*C a multiple of 8 so the packed output block satisfies the
    # (8, 128) BlockSpec constraint.
    mult = (8 // math.gcd(C, 8)) if pack else 1

    # Padded (VMEM-resident) bytes per batch element per grid step.
    in_block = 2 * _round_up(S, 8) * 128 * itemsize                         # dbl-buffered input
    out_block = 2 * _round_up(C, 8) * _round_up(PL, 128) * itemsize          # dbl-buffered output (upper bound)
    scratch = 0 if non_overlapping else _round_up(PL, 8) * 128 * itemsize    # gather scratch
    per_elem = in_block + out_block + scratch

    budget_bt = max(1, min(max_bt, target_bytes // per_elem))

    bt = min(budget_bt, B)
    bt = max(mult, (bt // mult) * mult)

    # Prefer >= 2 grid steps so v7x megacore can split the (parallel) batch axis.
    if pl.cdiv(B, bt) < 2 and B > mult:
        half = (B + 1) // 2
        bt = max(mult, (half // mult) * mult)

    grid = pl.cdiv(B, bt)
    b_pad = grid * bt
    return pack, bt, grid, b_pad, per_elem


def patchtst_patchify(past_values, *, sequence_length, patch_length,
                      patch_stride):
    """JAX/Pallas equivalent of PatchTSTPatchify.forward."""
    if sequence_length <= patch_length:
        raise ValueError(
            f"Sequence length ({sequence_length}) has to be greater than the "
            f"patch length ({patch_length})")
    num_patches = (max(sequence_length, patch_length)
                   - patch_length) // patch_stride + 1
    new_sequence_length = patch_length + patch_stride * (num_patches - 1)
    sequence_start = sequence_length - new_sequence_length

    B, S, C = past_values.shape
    if S != sequence_length:
        raise ValueError(
            f"Input sequence length ({S}) doesn't match model configuration "
            f"({sequence_length}).")

    dtype = past_values.dtype
    itemsize = jnp.dtype(dtype).itemsize
    PL = num_patches * patch_length
    non_overlapping = (patch_stride == patch_length)

    pack, bt, grid, b_pad, per_elem_bytes = _plan_batch_tile(
        B, S, C, PL, itemsize, non_overlapping)

    x = past_values
    if b_pad > B:
        x = jnp.pad(x, ((0, b_pad - B), (0, 0), (0, 0)))

    if non_overlapping:
        kernel = functools.partial(
            _patchify_nonoverlap_kernel,
            seq_start=sequence_start,
            new_seq_len=new_sequence_length,
            pack=pack, bt=bt, num_channels=C)
        scratch_shapes = []
    else:
        kernel = functools.partial(
            _patchify_gather_kernel,
            seq_start=sequence_start,
            patch_length=patch_length,
            patch_stride=patch_stride,
            num_patches=num_patches,
            pack=pack, bt=bt, num_channels=C)
        scratch_shapes = [pltpu.VMEM((bt, PL, C), dtype)]

    if pack:
        # Dense sublane-packed output: (B_pad*C, P*L).  Row-major bytes are
        # identical to (B_pad, C, P*L), so the reshape below is free.
        out_shape = jax.ShapeDtypeStruct((b_pad * C, PL), dtype)
        out_spec = pl.BlockSpec((bt * C, PL), lambda i: (i, 0))
    else:
        out_shape = jax.ShapeDtypeStruct((b_pad, C, PL), dtype)
        out_spec = pl.BlockSpec((bt, C, PL), lambda i: (i, 0, 0))

    step_bytes = bt * per_elem_bytes
    vmem_limit = int(min(48 << 20, max(16 << 20, step_bytes + (8 << 20))))

    cost = pl.CostEstimate(
        flops=0, transcendentals=0,
        bytes_accessed=(b_pad * S * C + b_pad * C * PL) * itemsize)

    out_flat = pl.pallas_call(
        kernel,
        out_shape=out_shape,
        grid_spec=pltpu.PrefetchScalarGridSpec(
            num_scalar_prefetch=0,
            grid=(grid,),
            in_specs=[pl.BlockSpec((bt, S, C), lambda i: (i, 0, 0))],
            out_specs=out_spec,
            scratch_shapes=scratch_shapes,
        ),
        compiler_params=pltpu.CompilerParams(
            dimension_semantics=("parallel",),
            vmem_limit_bytes=vmem_limit),
        cost_estimate=cost,
    )(x)

    out = out_flat.reshape(b_pad, C, num_patches, patch_length)
    if b_pad > B:
        out = out[:B]
    return out


def _reference_patchify(past_values, *, sequence_length, patch_length,
                        patch_stride):
    """Pure-JAX reference mirroring the PyTorch module exactly."""
    num_patches = (max(sequence_length, patch_length)
                   - patch_length) // patch_stride + 1
    new_sequence_length = patch_length + patch_stride * (num_patches - 1)
    sequence_start = sequence_length - new_sequence_length

    x = past_values[:, sequence_start:, :]                # (B, S', C)
    patches = jnp.stack(
        [x[:, p * patch_stride:p * patch_stride + patch_length, :]
         for p in range(num_patches)],
        axis=1)                                           # (B, P, L, C)
    patches = jnp.transpose(patches, (0, 1, 3, 2))        # (B, P, C, L)  (unfold)
    return jnp.transpose(patches, (0, 2, 1, 3))           # (B, C, P, L)  (transpose(-2,-3))


def _run_case(past_values, *, sequence_length, patch_length, patch_stride):
    out = patchtst_patchify(
        past_values,
        sequence_length=sequence_length,
        patch_length=patch_length,
        patch_stride=patch_stride)
    out = jax.block_until_ready(out)
    ref = _reference_patchify(
        past_values,
        sequence_length=sequence_length,
        patch_length=patch_length,
        patch_stride=patch_stride)
    assert out.shape == ref.shape, (out.shape, ref.shape)
    assert out.dtype == past_values.dtype
    assert bool(jnp.array_equal(out, ref)), "Pallas output mismatch vs reference"
    return out


if __name__ == "__main__":
    sequence_length = 18   # context_length
    key = jax.random.PRNGKey(0)

    # ---- C=4 (sublane-packed output path) -------------------------------------
    pv_c4 = jax.random.normal(
        key, (2, sequence_length, 4), dtype=jnp.float32)

    # Case 1: overlapping patches (gather + batched transpose, packed output).
    out1 = _run_case(pv_c4, sequence_length=sequence_length,
                     patch_length=8, patch_stride=4)
    assert out1.shape == (2, 4, 3, 8), out1.shape

    # Case 2: non-overlapping patches (crop + batched transpose, packed output).
    out2 = _run_case(pv_c4, sequence_length=sequence_length,
                     patch_length=8, patch_stride=8)
    assert out2.shape == (2, 4, 2, 8), out2.shape

    # ---- C=8 (3-D output path, >=2 grid steps for megacore) -------------------
    pv_c8 = jax.random.normal(
        jax.random.PRNGKey(0), (2, sequence_length, 8), dtype=jnp.float32)

    out3 = _run_case(pv_c8, sequence_length=sequence_length,
                     patch_length=8, patch_stride=4)
    assert out3.shape == (2, 8, 3, 8), out3.shape

    out4 = _run_case(pv_c8, sequence_length=sequence_length,
                     patch_length=8, patch_stride=8)
    assert out4.shape == (2, 8, 2, 8), out4.shape

    # ---- awkward batch (B=3: exercises the batch-padding path) ----------------
    pv_b3 = jax.random.normal(
        jax.random.PRNGKey(0), (3, sequence_length, 4), dtype=jnp.float32)
    out5 = _run_case(pv_b3, sequence_length=sequence_length,
                     patch_length=8, patch_stride=8)
    assert out5.shape == (3, 4, 2, 8), out5.shape

    print("KERNEL_OK")
</pallas_src>

<mosaic_0001>
module attributes {stable_mosaic.version = 11 : i64} {
  func.func @_patchify_gather_kernel(%arg0: i32, %arg1: memref<2x18x4xf32, #tpu.memory_space<vmem>>, %arg2: memref<8x24xf32, #tpu.memory_space<vmem>>, %arg3: memref<2x24x4xf32, #tpu.memory_space<vmem>>) attributes {dimension_semantics = [#tpu.dimension_semantics<parallel>], iteration_bounds = array<i64: 1>, scalar_prefetch = 0 : i64, scratch_operands = 1 : i64, tpu.core_type = #tpu.core_type<tc>, window_params = [{transform_indices = @transform_0, window_bounds = array<i64: 2, 18, 4>}, {transform_indices = @transform_1, window_bounds = array<i64: 8, 24>}]} {
    %c0 = arith.constant 0 : index
    %c2 = arith.constant 2 : index
    %c0_0 = arith.constant 0 : index
    %0 = vector.load %arg1[%c0, %c2, %c0_0] : memref<2x18x4xf32, #tpu.memory_space<vmem>>, vector<2x8x4xf32>
    %c0_1 = arith.constant 0 : index
    %c0_2 = arith.constant 0 : index
    %c0_3 = arith.constant 0 : index
    %1 = vector.load %arg3[%c0_1, %c0_2, %c0_3] : memref<2x24x4xf32, #tpu.memory_space<vmem>>, vector<2x8x4xf32>
    tpu.vector_store %arg3[%c0_1, %c0_2, %c0_3], %0 {strides = array<i32>} : memref<2x24x4xf32, #tpu.memory_space<vmem>>, vector<2x8x4xf32>,
    %c0_4 = arith.constant 0 : index
    %c6 = arith.constant 6 : index
    %c0_5 = arith.constant 0 : index
    %2 = vector.load %arg1[%c0_4, %c6, %c0_5] : memref<2x18x4xf32, #tpu.memory_space<vmem>>, vector<2x8x4xf32>
    %c0_6 = arith.constant 0 : index
    %c8 = arith.constant 8 : index
    %c0_7 = arith.constant 0 : index
    %3 = vector.load %arg3[%c0_6, %c8, %c0_7] : memref<2x24x4xf32, #tpu.memory_space<vmem>>, vector<2x8x4xf32>
    tpu.vector_store %arg3[%c0_6, %c8, %c0_7], %2 {strides = array<i32>} : memref<2x24x4xf32, #tpu.memory_space<vmem>>, vector<2x8x4xf32>,
    %c0_8 = arith.constant 0 : index
    %c10 = arith.constant 10 : index
    %c0_9 = arith.constant 0 : index
    %4 = vector.load %arg1[%c0_8, %c10, %c0_9] : memref<2x18x4xf32, #tpu.memory_space<vmem>>, vector<2x8x4xf32>
    %c0_10 = arith.constant 0 : index
    %c16 = arith.constant 16 : index
    %c0_11 = arith.constant 0 : index
    %5 = vector.load %arg3[%c0_10, %c16, %c0_11] : memref<2x24x4xf32, #tpu.memory_space<vmem>>, vector<2x8x4xf32>
    tpu.vector_store %arg3[%c0_10, %c16, %c0_11], %4 {strides = array<i32>} : memref<2x24x4xf32, #tpu.memory_space<vmem>>, vector<2x8x4xf32>,
    %c0_12 = arith.constant 0 : index
    %c0_13 = arith.constant 0 : index
    %c0_14 = arith.constant 0 : index
    %6 = vector.load %arg3[%c0_12, %c0_13, %c0_14] : memref<2x24x4xf32, #tpu.memory_space<vmem>>, vector<2x24x4xf32>
    %7 = tpu.transpose %6, [0, 2, 1] : vector<2x24x4xf32> -> vector<2x4x24xf32>
    %8 = vector.extract_strided_slice %7 {offsets = [0, 0, 0], sizes = [1, 4, 24], strides = [1, 1, 1]} : vector<2x4x24xf32> to vector<1x4x24xf32>
    %9 = vector.shape_cast %8 : vector<1x4x24xf32> to vector<4x24xf32>
    %c0_15 = arith.constant 0 : index
    %c0_16 = arith.constant 0 : index
    %10 = vector.load %arg2[%c0_15, %c0_16] : memref<8x24xf32, #tpu.memory_space<vmem>>, vector<4x24xf32>
    tpu.vector_store %arg2[%c0_15, %c0_16], %9 {strides = array<i32>} : memref<8x24xf32, #tpu.memory_space<vmem>>, vector<4x24xf32>,
    %11 = vector.extract_strided_slice %7 {offsets = [1, 0, 0], sizes = [1, 4, 24], strides = [1, 1, 1]} : vector<2x4x24xf32> to vector<1x4x24xf32>
    %12 = vector.shape_cast %11 : vector<1x4x24xf32> to vector<4x24xf32>
    %c4 = arith.constant 4 : index
    %c0_17 = arith.constant 0 : index
    %13 = vector.load %arg2[%c4, %c0_17] : memref<8x24xf32, #tpu.memory_space<vmem>>, vector<4x24xf32>
    tpu.vector_store %arg2[%c4, %c0_17], %12 {strides = array<i32>} : memref<8x24xf32, #tpu.memory_space<vmem>>, vector<4x24xf32>,
    return
  }
  func.func @transform_0(%arg0: i32) -> (i32, i32, i32) {
    %c0_i32 = arith.constant 0 : i32
    %c0_i32_0 = arith.constant 0 : i32
    %c0_i32_1 = arith.constant 0 : i32
    return %arg0, %c0_i32, %c0_i32_0 : i32, i32, i32
  }
  func.func @transform_1(%arg0: i32) -> (i32, i32) {
    %c0_i32 = arith.constant 0 : i32
    %c0_i32_0 = arith.constant 0 : i32
    return %arg0, %c0_i32 : i32, i32
  }
}

</mosaic_0001>

<llo_original>
// kernel: tpu_custom_call.1
$region0: #{tpu_custom_call.1}
  #allocation0 [shape = 'u32[]', space=smem, size = 0x4, offset = 0x4, fixed_abs, tag = 'smem constant byte address 0x4 - core index']
  #allocation1 [shape = 'u32[144,128]{1,0:T(1,128)}', space=vmem, size = 0x12000, scoped, tag = 'internal scratch']
  #allocation2 [shape = 'f32[2,24,4]{2,1,0:T(8,128)}', space=vmem, size = 0x6000, scoped, tag = 'scratch operand']
  %s0 = inlined_call_operand.vmem [shape: f32[2,18,4], index: 0, kind: input, shape index: {}]
  %s1 = inlined_call_operand.hbm [shape: f32[8,24], index: 1, kind: output, shape index: {}]
  %s2 = sld [smem:[#allocation0]]
  $region14: #{tpu_custom_call.1} parent=0
    _
  %s4 = ssub.s32 1, %s2
  %s5 = scalar_select 0, %s4, %s2
  $region1: #{tpu_custom_call.1} parent=0
    #allocation3 [shape = 'u8[4096]{0}', space=vmem, size = 0x1000, scoped, tag = 'output window, operand 0, single buffered']
    #allocation4 [shape = 's32[1]{0}', space=sflag, size = 0x4, scoped, tag = 'scoped memory for tpu_custom_call.1']
    %6 = vsyncpa [#allocation4], 0
    // Predicated region
    $region2: #{tpu_custom_call.1} parent=1 // pred_check
      _
    $region3: #{tpu_custom_call.1} parent=1 // pred_check_branch
      %8 = sbr.rel (0) target = $region5
    $region4: #{tpu_custom_call.1} parent=1 // pred_region
      _
    $region5: #{tpu_custom_call.1} parent=1 // pred_fallthru
      _
    %v9 = vld [vmem:[%s0 + $0x2] sm:$0xff]
    %v10 = vld [vmem:[%s0 + $0x1a] sm:$0xff]
    %vm11 = vcmask 31744
    %12 = vst.msk [vmem:[#allocation2] sm:$0xff] %vm11, %v9
    %13 = vst.msk [vmem:[#allocation2 + $0x18] sm:$0xff] %vm11, %v10
    %v14 = vld [vmem:[%s0 + $0x6] sm:$0xff]
    %v15 = vld [vmem:[%s0 + $0x1e] sm:$0xff]
    %16 = vst.msk [vmem:[#allocation2 + $0x8] sm:$0xff] %vm11, %v14
    %17 = vst.msk [vmem:[#allocation2 + $0x20] sm:$0xff] %vm11, %v15
    %v18 = vld [vmem:[%s0 + $0xa] sm:$0xff]
    %v19 = vld [vmem:[%s0 + $0x22] sm:$0xff]
    %20 = vst.msk [vmem:[#allocation2 + $0x10] sm:$0xff] %vm11, %v18
    %21 = vst.msk [vmem:[#allocation2 + $0x28] sm:$0xff] %vm11, %v19
    %v22 = vld [vmem:[#allocation2] sm:$0xff]
    %v23 = vld [vmem:[#allocation2 + $0x8] sm:$0xff]
    %v24 = vld [vmem:[#allocation2 + $0x10] sm:$0xff]
    %v25 = vld [vmem:[#allocation2 + $0x18] sm:$0xff]
    %v26 = vld [vmem:[#allocation2 + $0x20] sm:$0xff]
    %v27 = vld [vmem:[#allocation2 + $0x28] sm:$0xff]
    %28 = vxpose.xlu0.b32.start [1/16] %v22, 128
    %29 = vxpose.xlu0.b32.cont [2/16] %v23, 128
    %30 = vxpose.xlu0.b32.cont [3/16] %v24, 128
    %31 = vxpose.xlu0.b32.cont [4/16] 0.0, 128
    %32 = vxpose.xlu0.b32.cont [5/16] 0.0, 128
    %33 = vxpose.xlu0.b32.cont [6/16] 0.0, 128
    %34 = vxpose.xlu0.b32.cont [7/16] 0.0, 128
    %35 = vxpose.xlu0.b32.cont [8/16] 0.0, 128
    %36 = vxpose.xlu0.b32.cont [9/16] 0.0, 128
    %37 = vxpose.xlu0.b32.cont [10/16] 0.0, 128
    %38 = vxpose.xlu0.b32.cont [11/16] 0.0, 128
    %39 = vxpose.xlu0.b32.cont [12/16] 0.0, 128
    %40 = vxpose.xlu0.b32.cont [13/16] 0.0, 128
    %41 = vxpose.xlu0.b32.cont [14/16] 0.0, 128
    %42 = vxpose.xlu0.b32.cont [15/16] 0.0, 128
    %43 = vxpose.xlu0.b32.end [16/16] 0.0, 128
    %v44 = vpop.trf.xlu0
    %v45 = vpop.trf.xlu0
    %v46 = vpop.trf.xlu0
    %v47 = vpop.trf.xlu0
    %v48 = vpop.trf.xlu0
    %v49 = vpop.trf.xlu0
    %v50 = vpop.trf.xlu0
    %v51 = vpop.trf.xlu0
    %v52 = vpop.trf.xlu0
    %v53 = vpop.trf.xlu0
    %v54 = vpop.trf.xlu0
    %v55 = vpop.trf.xlu0
    %v56 = vpop.trf.xlu0
    %v57 = vpop.trf.xlu0
    %v58 = vpop.trf.xlu0
    %v59 = vpop.trf.xlu0
    %60 = vxpose.xlu0.b32.start [1/16] %v25, 128
    %61 = vxpose.xlu0.b32.cont [2/16] %v26, 128
    %62 = vxpose.xlu0.b32.cont [3/16] %v27, 128
    %63 = vxpose.xlu0.b32.cont [4/16] 0.0, 128
    %64 = vxpose.xlu0.b32.cont [5/16] 0.0, 128
    %65 = vxpose.xlu0.b32.cont [6/16] 0.0, 128
    %66 = vxpose.xlu0.b32.cont [7/16] 0.0, 128
    %67 = vxpose.xlu0.b32.cont [8/16] 0.0, 128
    %68 = vxpose.xlu0.b32.cont [9/16] 0.0, 128
    %69 = vxpose.xlu0.b32.cont [10/16] 0.0, 128
    %70 = vxpose.xlu0.b32.cont [11/16] 0.0, 128
    %71 = vxpose.xlu0.b32.cont [12/16] 0.0, 128
    %72 = vxpose.xlu0.b32.cont [13/16] 0.0, 128
    %73 = vxpose.xlu0.b32.cont [14/16] 0.0, 128
    %74 = vxpose.xlu0.b32.cont [15/16] 0.0, 128
    %75 = vxpose.xlu0.b32.end [16/16] 0.0, 128
    %v76 = vpop.trf.xlu0
    %v77 = vpop.trf.xlu0
    %v78 = vpop.trf.xlu0
    %v79 = vpop.trf.xlu0
    %v80 = vpop.trf.xlu0
    %v81 = vpop.trf.xlu0
    %v82 = vpop.trf.xlu0
    %v83 = vpop.trf.xlu0
    %v84 = vpop.trf.xlu0
    %v85 = vpop.trf.xlu0
    %v86 = vpop.trf.xlu0
    %v87 = vpop.trf.xlu0
    %v88 = vpop.trf.xlu0
    %v89 = vpop.trf.xlu0
    %v90 = vpop.trf.xlu0
    %v91 = vpop.trf.xlu0
    %vm92 = vcmask 191488
    %93 = vst.msk [vmem:[#allocation3] sm:$0xf] %vm92, %v44
    %94 = vst.msk [vmem:[#allocation3 + $0x4] sm:$0xf] %vm92, %v76
    // Predicated region
    $region6: #{tpu_custom_call.1} parent=1 // pred_check
      _
    $region7: #{tpu_custom_call.1} parent=1 // pred_check_branch
      %96 = sbr.rel (0) target = $region9
    $region8: #{tpu_custom_call.1} parent=1 // pred_region
      %s98 = ssub.s32 128, 128
      %99 = vsyncadd [#allocation4], %s98
      %s101 = sshll.u32 [#allocation3], 4
      %s102 = int_to_ptr.vmem [resolvable:$true] %s101
      %104 = dma.vmem_to_hbm [thread:$0]  %s102, 128, %s1, [#allocation4]
    $region9: #{tpu_custom_call.1} parent=1 // pred_fallthru
      _
    // Predicated region
    $region10: #{tpu_custom_call.1} parent=1 // pred_check
      _
    $region11: #{tpu_custom_call.1} parent=1 // pred_check_branch
      %106 = sbr.rel (0) target = $region13
    $region12: #{tpu_custom_call.1} parent=1 // pred_region
      %107 = dma.done [#allocation4], 128
    $region13: #{tpu_custom_call.1} parent=1 // pred_fallthru
      _
    %108 = vsyncpa [#allocation4], 1

</llo_original>
